<compile_context>
chip_gen: v6e
topology: v6e:2x2x1
jax: 0.10.0
libtpu: 0.0.40
codegen_flags: <defaults>
</compile_context>

<pallas_src>
import jax
import jax.numpy as jnp
from jax.experimental import pallas as pl
from jax.experimental.pallas import tpu as pltpu

WEIGHT_LOW = -0.03
WEIGHT_HIGH = 0.03
FC1 = 400
FC2 = 300
FC1_PAD = 512      # 400 -> next multiple of 128 (keeps h1 lane-dense)
FC2_PAD = 384      # 300 -> next multiple of 128 (keeps h2 lane-dense)
BN_EPS = 1e-5


def _pad_to(a, shape):
    pads = [(0, t - s) for s, t in zip(a.shape, shape)]
    return jnp.pad(a, pads)


# ----------------------------------------------------------------------------
# Kernel
# ----------------------------------------------------------------------------
def actor_kernel(x_ref, w1_ref, b1_ref, w2_ref, b2_ref, w3_ref,
                 gamma_ref, beta_ref, out_ref):
    x = x_ref[...]                                                 # (B, S) bf16

    # fc1: Linear + ReLU  (bf16 MXU, f32 accumulate).  K = S (unpadded).
    h1 = jnp.dot(x, w1_ref[...],
                 preferred_element_type=jnp.float32) + b1_ref[...]
    h1 = jnp.maximum(h1, 0.0)                                      # (B, 512) f32

    # fc2: Linear + ReLU
    h2 = jnp.dot(h1.astype(jnp.bfloat16), w2_ref[...],
                 preferred_element_type=jnp.float32) + b2_ref[...]
    h2 = jnp.maximum(h2, 0.0)                                      # (B, 384) f32

    # fc3: Linear, unpadded output width A.  No b3: training-mode BatchNorm
    # subtracts the batch mean, which cancels a per-feature constant exactly.
    y = jnp.dot(h2.astype(jnp.bfloat16), w3_ref[...],
                preferred_element_type=jnp.float32)                # (B, A) f32

    # BatchNorm1d, training mode (batch mean, biased variance).
    mean = jnp.mean(y, axis=0, keepdims=True)                      # (1, A)
    diff = y - mean
    var = jnp.mean(diff * diff, axis=0, keepdims=True)
    y_hat = diff * jax.lax.rsqrt(var + BN_EPS)
    y_bn = y_hat * gamma_ref[...] + beta_ref[...]

    # Tanh -> (B, A) output (no wrapper-side slicing needed).
    out_ref[...] = jnp.tanh(y_bn)


# ----------------------------------------------------------------------------
# Parameter init (mirrors initialize_weights: uniform(-0.03, 0.03) on every
# parameter, including the BatchNorm affine params) and packing.
# ----------------------------------------------------------------------------
def init_actor_params(key, state_size, action_size):
    ks = jax.random.split(key, 8)
    u = lambda k, shape: jax.random.uniform(
        k, shape, dtype=jnp.float32, minval=WEIGHT_LOW, maxval=WEIGHT_HIGH)
    w1 = u(ks[0], (state_size, FC1))
    b1 = u(ks[1], (1, FC1))
    w2 = u(ks[2], (FC1, FC2))
    b2 = u(ks[3], (1, FC2))
    w3 = u(ks[4], (FC2, action_size))
    b3 = u(ks[5], (1, action_size))        # cancelled by BN; kept for parity
    gamma = u(ks[6], (1, action_size))     # BatchNorm1d.weight
    beta = u(ks[7], (1, action_size))      # BatchNorm1d.bias
    return (w1, b1, w2, b2, w3, b3, gamma, beta)


def pack_actor_params(params, state_size, action_size):
    """Pad ONLY the hidden dims (400->512, 300->384) so intermediates stay
    lane-dense; keep the fc1 K dim (S) and the fc3 output dim (A) unpadded to
    minimize weight DMA.  Matmul weights cast to bf16.  Done once."""
    w1, b1, w2, b2, w3, b3, gamma, beta = params
    del b3  # exactly cancelled by training-mode BN's mean subtraction
    w1p = _pad_to(w1, (state_size, FC1_PAD)).astype(jnp.bfloat16)   # (S, 512)
    b1p = _pad_to(b1, (1, FC1_PAD))                                 # (1, 512)
    w2p = _pad_to(w2, (FC1_PAD, FC2_PAD)).astype(jnp.bfloat16)      # (512, 384)
    b2p = _pad_to(b2, (1, FC2_PAD))                                 # (1, 384)
    w3p = _pad_to(w3, (FC2_PAD, action_size)).astype(jnp.bfloat16)  # (384, A)
    gp = gamma                                                      # (1, A)
    bp = beta                                                       # (1, A)
    return (w1p, b1p, w2p, b2p, w3p, gp, bp)


# ----------------------------------------------------------------------------
# Wrapper
# ----------------------------------------------------------------------------
def actor_forward(x, packed, action_size):
    w1, b1, w2, b2, w3, gamma, beta = packed
    B = x.shape[0]
    assert B > 1, "BatchNorm1d in training mode requires batch size > 1"
    x_q = x.astype(jnp.bfloat16)                                    # (B, S)

    vmem = pl.BlockSpec(memory_space=pltpu.MemorySpace.VMEM)
    out = pl.pallas_call(
        actor_kernel,
        out_shape=jax.ShapeDtypeStruct((B, action_size), jnp.float32),
        in_specs=[vmem] * 8,
        out_specs=vmem,
    )(x_q, w1, b1, w2, b2, w3, gamma, beta)
    return out


# ----------------------------------------------------------------------------
# References
# ----------------------------------------------------------------------------
def actor_reference_spec(x, params):
    """Pure-f32 spec semantics (includes b3) — the PyTorch module's math."""
    w1, b1, w2, b2, w3, b3, gamma, beta = params
    h1 = jnp.maximum(x @ w1 + b1, 0.0)
    h2 = jnp.maximum(h1 @ w2 + b2, 0.0)
    y = h2 @ w3 + b3
    mean = jnp.mean(y, axis=0, keepdims=True)
    var = jnp.mean((y - mean) ** 2, axis=0, keepdims=True)
    return jnp.tanh((y - mean) / jnp.sqrt(var + BN_EPS) * gamma + beta)


def actor_reference_matched(x, packed, b3, action_size):
    """Same bf16 quantization as the kernel, but keeps b3 to confirm that the
    in-kernel b3 drop is exact under training-mode BatchNorm."""
    w1, b1, w2, b2, w3, gamma, beta = packed
    xq = x.astype(jnp.bfloat16)
    h1 = jnp.maximum(
        jnp.dot(xq, w1, preferred_element_type=jnp.float32) + b1, 0.0)
    h2 = jnp.maximum(
        jnp.dot(h1.astype(jnp.bfloat16), w2,
                preferred_element_type=jnp.float32) + b2, 0.0)
    y = jnp.dot(h2.astype(jnp.bfloat16), w3,
                preferred_element_type=jnp.float32) + b3
    mean = jnp.mean(y, axis=0, keepdims=True)
    var = jnp.mean((y - mean) ** 2, axis=0, keepdims=True)
    return jnp.tanh((y - mean) / jnp.sqrt(var + BN_EPS) * gamma + beta)


if __name__ == "__main__":
    key = jax.random.PRNGKey(0)
    k_param, k_x = jax.random.split(key)

    B = 8           # batch (training-mode BatchNorm1d requires batch > 1)
    STATE = 32      # params['state_size']
    ACTION = 8      # params['action_size']

    params = init_actor_params(k_param, STATE, ACTION)
    packed = pack_actor_params(params, STATE, ACTION)
    x = jax.random.normal(k_x, (B, STATE), dtype=jnp.float32)

    out = jax.block_until_ready(actor_forward(x, packed, ACTION))
    assert out.shape == (B, ACTION)

    # Tight check vs. a reference using the identical bf16 weights/activations
    # (verifies hidden-dim padding, BN, tanh, and the exact b3 cancellation).
    ref_m = actor_reference_matched(x, packed, params[5], ACTION)
    assert jnp.allclose(out, ref_m, atol=1e-3, rtol=1e-3), "mismatch vs matched ref"

    # Loose check vs. the full-f32 spec (bf16 weight quantization error only).
    ref_s = actor_reference_spec(x, params)
    assert jnp.allclose(out, ref_s, atol=2e-2, rtol=0.0), "mismatch vs f32 spec"

    # TODO(synk): BatchNorm1d running_mean/running_var updates (unbiased var)
    # are not produced; only the training-mode forward normalization is.
    print("KERNEL_OK")
</pallas_src>

<mosaic_0001>
module attributes {stable_mosaic.version = 11 : i64} {
  func.func @actor_kernel(%arg0: memref<8x32xbf16, #tpu.memory_space<vmem>>, %arg1: memref<32x512xbf16, #tpu.memory_space<vmem>>, %arg2: memref<1x512xf32, #tpu.memory_space<vmem>>, %arg3: memref<512x384xbf16, #tpu.memory_space<vmem>>, %arg4: memref<1x384xf32, #tpu.memory_space<vmem>>, %arg5: memref<384x8xbf16, #tpu.memory_space<vmem>>, %arg6: memref<1x8xf32, #tpu.memory_space<vmem>>, %arg7: memref<1x8xf32, #tpu.memory_space<vmem>>, %arg8: memref<8x8xf32, #tpu.memory_space<vmem>>) attributes {dimension_semantics = [], scalar_prefetch = 0 : i64, scratch_operands = 0 : i64, tpu.core_type = #tpu.core_type<tc>} {
    %c0 = arith.constant 0 : index
    %c0_0 = arith.constant 0 : index
    %0 = vector.load %arg0[%c0, %c0_0] : memref<8x32xbf16, #tpu.memory_space<vmem>>, vector<8x32xbf16>
    %c0_1 = arith.constant 0 : index
    %c0_2 = arith.constant 0 : index
    %1 = vector.load %arg1[%c0_1, %c0_2] : memref<32x512xbf16, #tpu.memory_space<vmem>>, vector<32x512xbf16>
    %cst = arith.constant dense<0.000000e+00> : vector<8x512xf32>
    %2 = tpu.matmul %0, %1, %cst {dimension_numbers = #tpu.dot_dimension_numbers<[1], [0], [0], [1], [0, 0, 1, 1], [], []>} : vector<8x32xbf16>, vector<32x512xbf16>, vector<8x512xf32> -> vector<8x512xf32>
    %c0_3 = arith.constant 0 : index
    %c0_4 = arith.constant 0 : index
    %3 = vector.load %arg2[%c0_3, %c0_4] : memref<1x512xf32, #tpu.memory_space<vmem>>, vector<1x512xf32>
    %4 = vector.broadcast %3 : vector<1x512xf32> to vector<8x512xf32>
    %5 = arith.addf %2, %4 : vector<8x512xf32>
    %cst_5 = arith.constant 0.000000e+00 : f32
    %6 = vector.broadcast %cst_5 : f32 to vector<8x512xf32>
    %7 = arith.maximumf %5, %6 : vector<8x512xf32>
    %8 = arith.truncf %7 : vector<8x512xf32> to vector<8x512xbf16>
    %c0_6 = arith.constant 0 : index
    %c0_7 = arith.constant 0 : index
    %9 = vector.load %arg3[%c0_6, %c0_7] : memref<512x384xbf16, #tpu.memory_space<vmem>>, vector<512x384xbf16>
    %cst_8 = arith.constant dense<0.000000e+00> : vector<8x384xf32>
    %10 = tpu.matmul %8, %9, %cst_8 {dimension_numbers = #tpu.dot_dimension_numbers<[1], [0], [0], [1], [0, 0, 1, 1], [], []>} : vector<8x512xbf16>, vector<512x384xbf16>, vector<8x384xf32> -> vector<8x384xf32>
    %c0_9 = arith.constant 0 : index
    %c0_10 = arith.constant 0 : index
    %11 = vector.load %arg4[%c0_9, %c0_10] : memref<1x384xf32, #tpu.memory_space<vmem>>, vector<1x384xf32>
    %12 = vector.broadcast %11 : vector<1x384xf32> to vector<8x384xf32>
    %13 = arith.addf %10, %12 : vector<8x384xf32>
    %cst_11 = arith.constant 0.000000e+00 : f32
    %14 = vector.broadcast %cst_11 : f32 to vector<8x384xf32>
    %15 = arith.maximumf %13, %14 : vector<8x384xf32>
    %16 = arith.truncf %15 : vector<8x384xf32> to vector<8x384xbf16>
    %c0_12 = arith.constant 0 : index
    %c0_13 = arith.constant 0 : index
    %17 = vector.load %arg5[%c0_12, %c0_13] : memref<384x8xbf16, #tpu.memory_space<vmem>>, vector<384x8xbf16>
    %cst_14 = arith.constant dense<0.000000e+00> : vector<8x8xf32>
    %18 = tpu.matmul %16, %17, %cst_14 {dimension_numbers = #tpu.dot_dimension_numbers<[1], [0], [0], [1], [0, 0, 1, 1], [], []>} : vector<8x384xbf16>, vector<384x8xbf16>, vector<8x8xf32> -> vector<8x8xf32>
    %cst_15 = arith.constant dense<0.000000e+00> : vector<8xf32>
    %19 = vector.multi_reduction <add>, %18, %cst_15 [0] : vector<8x8xf32> to vector<8xf32>
    %20 = vector.shape_cast %19 : vector<8xf32> to vector<1x8xf32>
    %cst_16 = arith.constant 8.000000e+00 : f32
    %21 = vector.broadcast %cst_16 : f32 to vector<1x8xf32>
    %22 = arith.divf %20, %21 : vector<1x8xf32>
    %23 = vector.broadcast %22 : vector<1x8xf32> to vector<8x8xf32>
    %24 = arith.subf %18, %23 : vector<8x8xf32>
    %25 = arith.mulf %24, %24 : vector<8x8xf32>
    %cst_17 = arith.constant dense<0.000000e+00> : vector<8xf32>
    %26 = vector.multi_reduction <add>, %25, %cst_17 [0] : vector<8x8xf32> to vector<8xf32>
    %27 = vector.shape_cast %26 : vector<8xf32> to vector<1x8xf32>
    %cst_18 = arith.constant 8.000000e+00 : f32
    %28 = vector.broadcast %cst_18 : f32 to vector<1x8xf32>
    %29 = arith.divf %27, %28 : vector<1x8xf32>
    %cst_19 = arith.constant 9.99999974E-6 : f32
    %30 = vector.broadcast %cst_19 : f32 to vector<1x8xf32>
    %31 = arith.addf %29, %30 : vector<1x8xf32>
    %32 = math.rsqrt %31 : vector<1x8xf32>
    %33 = vector.broadcast %32 : vector<1x8xf32> to vector<8x8xf32>
    %34 = arith.mulf %24, %33 : vector<8x8xf32>
    %c0_20 = arith.constant 0 : index
    %c0_21 = arith.constant 0 : index
    %35 = vector.load %arg6[%c0_20, %c0_21] : memref<1x8xf32, #tpu.memory_space<vmem>>, vector<1x8xf32>
    %36 = vector.broadcast %35 : vector<1x8xf32> to vector<8x8xf32>
    %37 = arith.mulf %34, %36 : vector<8x8xf32>
    %c0_22 = arith.constant 0 : index
    %c0_23 = arith.constant 0 : index
    %38 = vector.load %arg7[%c0_22, %c0_23] : memref<1x8xf32, #tpu.memory_space<vmem>>, vector<1x8xf32>
    %39 = vector.broadcast %38 : vector<1x8xf32> to vector<8x8xf32>
    %40 = arith.addf %37, %39 : vector<8x8xf32>
    %41 = math.tanh %40 : vector<8x8xf32>
    %c0_24 = arith.constant 0 : index
    %c0_25 = arith.constant 0 : index
    %42 = vector.load %arg8[%c0_24, %c0_25] : memref<8x8xf32, #tpu.memory_space<vmem>>, vector<8x8xf32>
    tpu.vector_store %arg8[%c0_24, %c0_25], %41 {strides = array<i32>} : memref<8x8xf32, #tpu.memory_space<vmem>>, vector<8x8xf32>,
    return
  }
}

</mosaic_0001>

<llo_original>
// kernel: tpu_custom_call.1
$region0: #{tpu_custom_call.1}
  #allocation0 [shape = 'u32[]', space=smem, size = 0x4, offset = 0x4, fixed_abs, tag = 'smem constant byte address 0x4 - core index']
  #allocation1 [shape = 'u32[144,128]{1,0:T(1,128)}', space=vmem, size = 0x12000, scoped, tag = 'internal scratch']
  %s0 = inlined_call_operand.vmem [shape: bf16[8,32], index: 0, kind: input, shape index: {}]
  %s1 = inlined_call_operand.vmem [shape: bf16[32,512], index: 1, kind: input, shape index: {}]
  %s2 = inlined_call_operand.vmem [shape: f32[1,512], index: 2, kind: input, shape index: {}]
  %s3 = inlined_call_operand.hbm [shape: bf16[512,384], index: 3, kind: input, shape index: {}]
  %s4 = inlined_call_operand.vmem [shape: f32[1,384], index: 4, kind: input, shape index: {}]
  %s5 = inlined_call_operand.vmem [shape: bf16[384,8], index: 5, kind: input, shape index: {}]
  %s6 = inlined_call_operand.vmem [shape: f32[1,8], index: 6, kind: input, shape index: {}]
  %s7 = inlined_call_operand.vmem [shape: f32[1,8], index: 7, kind: input, shape index: {}]
  %s8 = inlined_call_operand.hbm [shape: f32[8,8], index: 8, kind: output, shape index: {}]
  %s9 = sld [smem:[#allocation0]]
  $region46: #{tpu_custom_call.1} parent=0
    _
  %s11 = ssub.s32 1, %s9
  %s12 = scalar_select 0, %s11, %s9
  $region1: #{tpu_custom_call.1} parent=0
    #allocation2 [shape = 'u8[393216]{0}', space=vmem, size = 0x60000, scoped, tag = 'input window, operand 3, single buffered']
    #allocation3 [shape = 's32[1]{0}', space=sflag, size = 0x4, scoped, tag = 'scoped memory for tpu_custom_call.1']
    #allocation4 [shape = 's32[1]{0}', space=sflag, size = 0x4, scoped, tag = 'scoped memory for tpu_custom_call.1']
    #allocation5 [shape = 'u8[4096]{0}', space=vmem, size = 0x1000, scoped, tag = 'output window, operand 0, single buffered']
    %13 = vsyncpa [#allocation3], 0
    %14 = vsyncpa [#allocation4], 0
    // Predicated region
    $region2: #{tpu_custom_call.1} parent=1 // pred_check
      _
    $region3: #{tpu_custom_call.1} parent=1 // pred_check_branch
      %16 = sbr.rel (0) target = $region5
    $region4: #{tpu_custom_call.1} parent=1 // pred_region
      _
    $region5: #{tpu_custom_call.1} parent=1 // pred_fallthru
      _
    // Predicated region
    $region6: #{tpu_custom_call.1} parent=1 // pred_check
      _
    $region7: #{tpu_custom_call.1} parent=1 // pred_check_branch
      %18 = sbr.rel (0) target = $region9
    $region8: #{tpu_custom_call.1} parent=1 // pred_region
      _
    $region9: #{tpu_custom_call.1} parent=1 // pred_fallthru
      _
    // Predicated region
    $region10: #{tpu_custom_call.1} parent=1 // pred_check
      _
    $region11: #{tpu_custom_call.1} parent=1 // pred_check_branch
      %20 = sbr.rel (0) target = $region13
    $region12: #{tpu_custom_call.1} parent=1 // pred_region
      _
    $region13: #{tpu_custom_call.1} parent=1 // pred_fallthru
      _
    // Predicated region
    $region14: #{tpu_custom_call.1} parent=1 // pred_check
      _
    $region15: #{tpu_custom_call.1} parent=1 // pred_check_branch
      %22 = sbr.rel (0) target = $region17
    $region16: #{tpu_custom_call.1} parent=1 // pred_region
      %s24 = ssub.s32 12288, 12288
      %25 = vsyncadd [#allocation3], %s24
      %s26 = sshll.u32 [#allocation2], 4
      %s27 = int_to_ptr.vmem [resolvable:$true] %s26
      %32 = dma.hbm_to_vmem [thread:$0]  %s3, 12288, %s27, [#allocation3], 192, 192, 12
    $region17: #{tpu_custom_call.1} parent=1 // pred_fallthru
      _
    // Predicated region
    $region18: #{tpu_custom_call.1} parent=1 // pred_check
      _
    $region19: #{tpu_custom_call.1} parent=1 // pred_check_branch
      %34 = sbr.rel (0) target = $region21
    $region20: #{tpu_custom_call.1} parent=1 // pred_region
      _
    $region21: #{tpu_custom_call.1} parent=1 // pred_fallthru
      _
    // Predicated region
    $region22: #{tpu_custom_call.1} parent=1 // pred_check
      _
    $region23: #{tpu_custom_call.1} parent=1 // pred_check_branch
      %36 = sbr.rel (0) target = $region25
    $region24: #{tpu_custom_call.1} parent=1 // pred_region
      _
    $region25: #{tpu_custom_call.1} parent=1 // pred_fallthru
      _
    // Predicated region
    $region26: #{tpu_custom_call.1} parent=1 // pred_check
      _
    $region27: #{tpu_custom_call.1} parent=1 // pred_check_branch
      %38 = sbr.rel (0) target = $region29
    $region28: #{tpu_custom_call.1} parent=1 // pred_region
      _
    $region29: #{tpu_custom_call.1} parent=1 // pred_fallthru
      _
    // Predicated region
    $region30: #{tpu_custom_call.1} parent=1 // pred_check
      _
    $region31: #{tpu_custom_call.1} parent=1 // pred_check_branch
      %40 = sbr.rel (0) target = $region33
    $region32: #{tpu_custom_call.1} parent=1 // pred_region
      _
    $region33: #{tpu_custom_call.1} parent=1 // pred_fallthru
      _
    // Predicated region
    $region34: #{tpu_custom_call.1} parent=1 // pred_check
      _
    $region35: #{tpu_custom_call.1} parent=1 // pred_check_branch
      %42 = sbr.rel (0) target = $region37
    $region36: #{tpu_custom_call.1} parent=1 // pred_region
      %43 = dma.done [#allocation3], 12288
    $region37: #{tpu_custom_call.1} parent=1 // pred_fallthru
      _
    %v45 = vld [vmem:[%s0] sm:$0xf]
    %v46 = vld [vmem:[%s1] sm:$0xff]
    %v47 = vld [vmem:[%s1 + $0x8] sm:$0xff]
    %v48 = vld [vmem:[%s1 + $0x10] sm:$0xff]
    %v49 = vld [vmem:[%s1 + $0x18] sm:$0xff]
    %v50 = vld [vmem:[%s1 + $0x20] sm:$0xff]
    %v51 = vld [vmem:[%s1 + $0x28] sm:$0xff]
    %v52 = vld [vmem:[%s1 + $0x30] sm:$0xff]
    %v53 = vld [vmem:[%s1 + $0x38] sm:$0xff]
    %v54 = vld [vmem:[%s2] sm:$0xf]
    %v56 = vlaneseq
    %v57 = vshrl.u32 %v56, 7
    %v58 = vsub.s32 0, %v57
    %v59 = vrot.slane %v54, %v58
    %v60 = vlaneseq
    %v61 = vshrl.u32 %v60, 7
    %v62 = vsub.s32 1, %v61
    %v63 = vrot.slane %v54, %v62
    %v64 = vlaneseq
    %v65 = vshrl.u32 %v64, 7
    %v66 = vsub.s32 2, %v65
    %v67 = vrot.slane %v54, %v66
    %v68 = vlaneseq
    %v69 = vshrl.u32 %v68, 7
    %v70 = vsub.s32 3, %v69
    %v71 = vrot.slane %v54, %v70
    %v84 = vunpack.c.l.b16 %v46
    %v85 = vunpack.c.h.b16 %v46
    %v86 = vunpack.c.l.b16 %v47
    %v87 = vunpack.c.h.b16 %v47
    %v88 = vunpack.c.l.b16 %v48
    %v89 = vunpack.c.h.b16 %v48
    %v90 = vunpack.c.l.b16 %v49
    %v91 = vunpack.c.h.b16 %v49
    %v92 = vunpack.c.l.b16 %v50
    %v93 = vunpack.c.h.b16 %v50
    %v94 = vunpack.c.l.b16 %v51
    %v95 = vunpack.c.h.b16 %v51
    %v96 = vunpack.c.l.b16 %v52
    %v97 = vunpack.c.h.b16 %v52
    %v98 = vunpack.c.l.b16 %v53
    %v99 = vunpack.c.h.b16 %v53
    %v100 = vpack.c.b16 %v88, %v84
    %v101 = vpack.c.b16 %v89, %v85
    %v102 = vpack.c.b16 %v90, %v86
    %v103 = vpack.c.b16 %v91, %v87
    %v104 = vpack.c.b16 %v96, %v92
    %v105 = vpack.c.b16 %v97, %v93
    %v106 = vpack.c.b16 %v98, %v94
    %v107 = vpack.c.b16 %v99, %v95
    %vm116 = vcmask 261120
    %v118 = vsel %vm116, %v45, 0
    %120 = vmatprep.subr.bf16.mxu0 0
    %121 = vmatpush1.bf16.msra.mxu0 0
    %122 = vmatprep.subr.bf16.mxu0 0
    %123 = vmatpush1.bf16.msra.mxu0 0
    %124 = vmatprep.subr.bf16.mxu0 0
    %125 = vmatpush1.bf16.msra.mxu0 0
    %126 = vmatprep.subr.bf16.mxu0 0
    %127 = vmatpush1.bf16.msra.mxu0 0
    %128 = vmatprep.subr.bf16.mxu0 0
    %129 = vmatpush1.bf16.msra.mxu0 0
    %130 = vmatprep.subr.bf16.mxu0 0
    %131 = vmatpush1.bf16.msra.mxu0 0
    %132 = vmatprep.subr.bf16.mxu0 %v105
    %133 = vmatpush1.bf16.msra.mxu0 %v104
    %134 = vmatprep.subr.bf16.mxu0 %v101
    %135 = vmatpush1.bf16.msra.mxu0 %v100
    %136 = vmatprep.subr.bf16.mxu0 0
    %137 = vmatpush2.bf16.msra.mxu0 0
    %138 = vmatprep.subr.bf16.mxu0 0
    %139 = vmatpush2.bf16.msra.mxu0 0
    %140 = vmatprep.subr.bf16.mxu0 0
    %141 = vmatpush2.bf16.msra.mxu0 0
    %142 = vmatprep.subr.bf16.mxu0 0
    %143 = vmatpush2.bf16.msra.mxu0 0
    %144 = vmatprep.subr.bf16.mxu0 0
    %145 = vmatpush2.bf16.msra.mxu0 0
    %146 = vmatprep.subr.bf16.mxu0 0
    %147 = vmatpush2.bf16.msra.mxu0 0
    %148 = vmatprep.subr.bf16.mxu0 0
    %149 = vmatpush2.bf16.msra.mxu0 0
    %150 = vmatprep.subr.bf16.mxu0 0
    %151 = vmatpush2.bf16.msra.mxu0 0
    %152 = vmatprep.mubr.bf16.mxu0 0
    %153 = vmatmul.mubr.bf16.gmra.mxu0 %v118
    %v154 = vpop.f32.mrf.mxu0
    %v155 = vadd.f32 %v59, %v154
    %v156 = vpop.f32.mrf.mxu0
    %v157 = vadd.f32 %v63, %v156
    %v158 = vpop.f32.mrf.mxu0
    %v159 = vpop.f32.mrf.mxu0
    %160 = vdwg.mxu0
    %161 = vmatprep.subr.bf16.mxu0 0
    %162 = vmatpush1.bf16.msra.mxu0 0
    %163 = vmatprep.subr.bf16.mxu0 0
    %164 = vmatpush1.bf16.msra.mxu0 0
    %165 = vmatprep.subr.bf16.mxu0 0
    %166 = vmatpush1.bf16.msra.mxu0 0
    %167 = vmatprep.subr.bf16.mxu0 0
    %168 = vmatpush1.bf16.msra.mxu0 0
    %169 = vmatprep.subr.bf16.mxu0 0
    %170 = vmatpush1.bf16.msra.mxu0 0
    %171 = vmatprep.subr.bf16.mxu0 0
    %172 = vmatpush1.bf16.msra.mxu0 0
    %173 = vmatprep.subr.bf16.mxu0 %v107
    %174 = vmatpush1.bf16.msra.mxu0 %v106
    %175 = vmatprep.subr.bf16.mxu0 %v103
    %176 = vmatpush1.bf16.msra.mxu0 %v102
    %177 = vmatprep.subr.bf16.mxu0 0
    %178 = vmatpush2.bf16.msra.mxu0 0
    %179 = vmatprep.subr.bf16.mxu0 0
    %180 = vmatpush2.bf16.msra.mxu0 0
    %181 = vmatprep.subr.bf16.mxu0 0
    %182 = vmatpush2.bf16.msra.mxu0 0
    %183 = vmatprep.subr.bf16.mxu0 0
    %184 = vmatpush2.bf16.msra.mxu0 0
    %185 = vmatprep.subr.bf16.mxu0 0
    %186 = vmatpush2.bf16.msra.mxu0 0
    %187 = vmatprep.subr.bf16.mxu0 0
    %188 = vmatpush2.bf16.msra.mxu0 0
    %189 = vmatprep.subr.bf16.mxu0 0
    %190 = vmatpush2.bf16.msra.mxu0 0
    %191 = vmatprep.subr.bf16.mxu0 0
    %192 = vmatpush2.bf16.msra.mxu0 0
    %193 = vmatprep.mubr.bf16.mxu0 0
    %194 = vmatmul.mubr.bf16.gmra.mxu0 %v118
    %v195 = vpop.f32.mrf.mxu0
    %v196 = vadd.f32 %v67, %v195
    %v197 = vpop.f32.mrf.mxu0
    %v198 = vadd.f32 %v71, %v197
    %v199 = vpop.f32.mrf.mxu0
    %v200 = vpop.f32.mrf.mxu0
    %201 = vdwg.mxu0
    %v202 = vmax.f32 %v155, 0.0
    %v203 = vmax.f32 %v157, 0.0
    %v204 = vmax.f32 %v196, 0.0
    %v205 = vmax.f32 %v198, 0.0
    %v206 = vpack.c.bf16 %v202, %v202
    %v207 = vpack.c.bf16 %v203, %v203
    %v208 = vpack.c.bf16 %v204, %v204
    %v209 = vpack.c.bf16 %v205, %v205
    %v210 = vld [vmem:[#allocation2] sm:$0xff]
    %v211 = vld [vmem:[#allocation2 + $0x8] sm:$0xf]
    %v212 = vld [vmem:[#allocation2 + $0xc] sm:$0xff]
    %v213 = vld [vmem:[#allocation2 + $0x14] sm:$0xf]
    %v214 = vld [vmem:[#allocation2 + $0x18] sm:$0xff]
    %v215 = vld [vmem:[#allocation2 + $0x20] sm:$0xf]
    %v216 = vld [vmem:[#allocation2 + $0x24] sm:$0xff]
    %v217 = vld [vmem:[#allocation2 + $0x2c] sm:$0xf]
    %v218 = vld [vmem:[#allocation2 + $0x30] sm:$0xff]
    %v219 = vld [vmem:[#allocation2 + $0x38] sm:$0xf]
    %v220 = vld [vmem:[#allocation2 + $0x3c] sm:$0xff]
    %v221 = vld [vmem:[#allocation2 + $0x44] sm:$0xf]
    %v222 = vld [vmem:[#allocation2 + $0x48] sm:$0xff]
    %v223 = vld [vmem:[#allocation2 + $0x50] sm:$0xf]
    %v224 = vld [vmem:[#allocation2 + $0x54] sm:$0xff]
    %v225 = vld [vmem:[#allocation2 + $0x5c] sm:$0xf]
    %v226 = vld [vmem:[#allocation2 + $0x60] sm:$0xff]
    %v227 = vld [vmem:[#allocation2 + $0x68] sm:$0xf]
    %v228 = vld [vmem:[#allocation2 + $0x6c] sm:$0xff]
    %v229 = vld [vmem:[#allocation2 + $0x74] sm:$0xf]
    %v230 = vld [vmem:[#allocation2 + $0x78] sm:$0xff]
    %v231 = vld [vmem:[#allocation2 + $0x80] sm:$0xf]
    %v232 = vld [vmem:[#allocation2 + $0x84] sm:$0xff]
    %v233 = vld [vmem:[#allocation2 + $0x8c] sm:$0xf]
    %v234 = vld [vmem:[#allocation2 + $0x90] sm:$0xff]
    %v235 = vld [vmem:[#allocation2 + $0x98] sm:$0xf]
    %v236 = vld [vmem:[#allocation2 + $0x9c] sm:$0xff]
    %v237 = vld [vmem:[#allocation2 + $0xa4] sm:$0xf]
    %v238 = vld [vmem:[#allocation2 + $0xa8] sm:$0xff]
    %v239 = vld [vmem:[#allocation2 + $0xb0] sm:$0xf]
    %v240 = vld [vmem:[#allocation2 + $0xb4] sm:$0xff]
    %v241 = vld [vmem:[#allocation2 + $0xbc] sm:$0xf]
    %v242 = vld [vmem:[#allocation2 + $0xc0] sm:$0xff]
    %v243 = vld [vmem:[#allocation2 + $0xc8] sm:$0xf]
    %v244 = vld [vmem:[#allocation2 + $0xcc] sm:$0xff]
    %v245 = vld [vmem:[#allocation2 + $0xd4] sm:$0xf]
    %v246 = vld [vmem:[#allocation2 + $0xd8] sm:$0xff]
    %v247 = vld [vmem:[#allocation2 + $0xe0] sm:$0xf]
    %v248 = vld [vmem:[#allocation2 + $0xe4] sm:$0xff]
    %v249 = vld [vmem:[#allocation2 + $0xec] sm:$0xf]
    %v250 = vld [vmem:[#allocation2 + $0xf0] sm:$0xff]
    %v251 = vld [vmem:[#allocation2 + $0xf8] sm:$0xf]
    %v252 = vld [vmem:[#allocation2 + $0xfc] sm:$0xff]
    %v253 = vld [vmem:[#allocation2 + $0x104] sm:$0xf]
    %v254 = vld [vmem:[#allocation2 + $0x108] sm:$0xff]
    %v255 = vld [vmem:[#allocation2 + $0x110] sm:$0xf]
    %v256 = vld [vmem:[#allocation2 + $0x114] sm:$0xff]
    %v257 = vld [vmem:[#allocation2 + $0x11c] sm:$0xf]
    %v258 = vld [vmem:[#allocation2 + $0x120] sm:$0xff]
    %v259 = vld [vmem:[#allocation2 + $0x128] sm:$0xf]
    %v260 = vld [vmem:[#allocation2 + $0x12c] sm:$0xff]
    %v261 = vld [vmem:[#allocation2 + $0x134] sm:$0xf]
    %v262 = vld [vmem:[#allocation2 + $0x138] sm:$0xff]
    %v263 = vld [vmem:[#allocation2 + $0x140] sm:$0xf]
    %v264 = vld [vmem:[#allocation2 + $0x144] sm:$0xff]
    %v265 = vld [vmem:[#allocation2 + $0x14c] sm:$0xf]
    %v266 = vld [vmem:[#allocation2 + $0x150] sm:$0xff]
    %v267 = vld [vmem:[#allocation2 + $0x158] sm:$0xf]
    %v268 = vld [vmem:[#allocation2 + $0x15c] sm:$0xff]
    %v269 = vld [vmem:[#allocation2 + $0x164] sm:$0xf]
    %v270 = vld [vmem:[#allocation2 + $0x168] sm:$0xff]
    %v271 = vld [vmem:[#allocation2 + $0x170] sm:$0xf]
    %v272 = vld [vmem:[#allocation2 + $0x174] sm:$0xff]
    %v273 = vld [vmem:[#allocation2 + $0x17c] sm:$0xf]
    %v274 = vld [vmem:[#allocation2 + $0x180] sm:$0xff]
    %v275 = vld [vmem:[#allocation2 + $0x188] sm:$0xf]
    %v276 = vld [vmem:[#allocation2 + $0x18c] sm:$0xff]
    %v277 = vld [vmem:[#allocation2 + $0x194] sm:$0xf]
    %v278 = vld [vmem:[#allocation2 + $0x198] sm:$0xff]
    %v279 = vld [vmem:[#allocation2 + $0x1a0] sm:$0xf]
    %v280 = vld [vmem:[#allocation2 + $0x1a4] sm:$0xff]
    %v281 = vld [vmem:[#allocation2 + $0x1ac] sm:$0xf]
    %v282 = vld [vmem:[#allocation2 + $0x1b0] sm:$0xff]
    %v283 = vld [vmem:[#allocation2 + $0x1b8] sm:$0xf]
    %v284 = vld [vmem:[#allocation2 + $0x1bc] sm:$0xff]
    %v285 = vld [vmem:[#allocation2 + $0x1c4] sm:$0xf]
    %v286 = vld [vmem:[#allocation2 + $0x1c8] sm:$0xff]
    %v287 = vld [vmem:[#allocation2 + $0x1d0] sm:$0xf]
    %v288 = vld [vmem:[#allocation2 + $0x1d4] sm:$0xff]
    %v289 = vld [vmem:[#allocation2 + $0x1dc] sm:$0xf]
    %v290 = vld [vmem:[#allocation2 + $0x1e0] sm:$0xff]
    %v291 = vld [vmem:[#allocation2 + $0x1e8] sm:$0xf]
    %v292 = vld [vmem:[#allocation2 + $0x1ec] sm:$0xff]
    %v293 = vld [vmem:[#allocation2 + $0x1f4] sm:$0xf]
    %v294 = vld [vmem:[#allocation2 + $0x1f8] sm:$0xff]
    %v295 = vld [vmem:[#allocation2 + $0x200] sm:$0xf]
    %v296 = vld [vmem:[#allocation2 + $0x204] sm:$0xff]
    %v297 = vld [vmem:[#allocation2 + $0x20c] sm:$0xf]
    %v298 = vld [vmem:[#allocation2 + $0x210] sm:$0xff]
    %v299 = vld [vmem:[#allocation2 + $0x218] sm:$0xf]
    %v300 = vld [vmem:[#allocation2 + $0x21c] sm:$0xff]
    %v301 = vld [vmem:[#allocation2 + $0x224] sm:$0xf]
    %v302 = vld [vmem:[#allocation2 + $0x228] sm:$0xff]
    %v303 = vld [vmem:[#allocation2 + $0x230] sm:$0xf]
    %v304 = vld [vmem:[#allocation2 + $0x234] sm:$0xff]
    %v305 = vld [vmem:[#allocation2 + $0x23c] sm:$0xf]
    %v306 = vld [vmem:[#allocation2 + $0x240] sm:$0xff]
    %v307 = vld [vmem:[#allocation2 + $0x248] sm:$0xf]
    %v308 = vld [vmem:[#allocation2 + $0x24c] sm:$0xff]
    %v309 = vld [vmem:[#allocation2 + $0x254] sm:$0xf]
    %v310 = vld [vmem:[#allocation2 + $0x258] sm:$0xff]
    %v311 = vld [vmem:[#allocation2 + $0x260] sm:$0xf]
    %v312 = vld [vmem:[#allocation2 + $0x264] sm:$0xff]
    %v313 = vld [vmem:[#allocation2 + $0x26c] sm:$0xf]
    %v314 = vld [vmem:[#allocation2 + $0x270] sm:$0xff]
    %v315 = vld [vmem:[#allocation2 + $0x278] sm:$0xf]
    %v316 = vld [vmem:[#allocation2 + $0x27c] sm:$0xff]
    %v317 = vld [vmem:[#allocation2 + $0x284] sm:$0xf]
    %v318 = vld [vmem:[#allocation2 + $0x288] sm:$0xff]
    %v319 = vld [vmem:[#allocation2 + $0x290] sm:$0xf]
    %v320 = vld [vmem:[#allocation2 + $0x294] sm:$0xff]
    %v321 = vld [vmem:[#allocation2 + $0x29c] sm:$0xf]
    %v322 = vld [vmem:[#allocation2 + $0x2a0] sm:$0xff]
    %v323 = vld [vmem:[#allocation2 + $0x2a8] sm:$0xf]
    %v324 = vld [vmem:[#allocation2 + $0x2ac] sm:$0xff]
    %v325 = vld [vmem:[#allocation2 + $0x2b4] sm:$0xf]
    %v326 = vld [vmem:[#allocation2 + $0x2b8] sm:$0xff]
    %v327 = vld [vmem:[#allocation2 + $0x2c0] sm:$0xf]
    %v328 = vld [vmem:[#allocation2 + $0x2c4] sm:$0xff]
    %v329 = vld [vmem:[#allocation2 + $0x2cc] sm:$0xf]
    %v330 = vld [vmem:[#allocation2 + $0x2d0] sm:$0xff]
    %v331 = vld [vmem:[#allocation2 + $0x2d8] sm:$0xf]
    %v332 = vld [vmem:[#allocation2 + $0x2dc] sm:$0xff]
    %v333 = vld [vmem:[#allocation2 + $0x2e4] sm:$0xf]
    %v334 = vld [vmem:[#allocation2 + $0x2e8] sm:$0xff]
    %v335 = vld [vmem:[#allocation2 + $0x2f0] sm:$0xf]
    %v336 = vld [vmem:[#allocation2 + $0x2f4] sm:$0xff]
    %v337 = vld [vmem:[#allocation2 + $0x2fc] sm:$0xf]
    %v338 = vld [vmem:[%s4] sm:$0x7]
    %v340 = vlaneseq
    %v341 = vshrl.u32 %v340, 7
    %v342 = vsub.s32 0, %v341
    %v343 = vrot.slane %v338, %v342
    %v344 = vlaneseq
    %v345 = vshrl.u32 %v344, 7
    %v346 = vsub.s32 1, %v345
    %v347 = vrot.slane %v338, %v346
    %v348 = vlaneseq
    %v349 = vshrl.u32 %v348, 7
    %v350 = vsub.s32 2, %v349
    %v351 = vrot.slane %v338, %v350
    %v483 = vunpack.c.l.b16 %v210
    %v484 = vunpack.c.h.b16 %v210
    %v485 = vunpack.c.l.b16 %v211
    %v486 = vunpack.c.l.b16 %v212
    %v487 = vunpack.c.h.b16 %v212
    %v488 = vunpack.c.l.b16 %v213
    %v489 = vunpack.c.l.b16 %v214
    %v490 = vunpack.c.h.b16 %v214
    %v491 = vunpack.c.l.b16 %v215
    %v492 = vunpack.c.l.b16 %v216
    %v493 = vunpack.c.h.b16 %v216
    %v494 = vunpack.c.l.b16 %v217
    %v495 = vunpack.c.l.b16 %v218
    %v496 = vunpack.c.h.b16 %v218
    %v497 = vunpack.c.l.b16 %v219
    %v498 = vunpack.c.l.b16 %v220
    %v499 = vunpack.c.h.b16 %v220
    %v500 = vunpack.c.l.b16 %v221
    %v501 = vunpack.c.l.b16 %v222
    %v502 = vunpack.c.h.b16 %v222
    %v503 = vunpack.c.l.b16 %v223
    %v504 = vunpack.c.l.b16 %v224
    %v505 = vunpack.c.h.b16 %v224
    %v506 = vunpack.c.l.b16 %v225
    %v507 = vunpack.c.l.b16 %v226
    %v508 = vunpack.c.h.b16 %v226
    %v509 = vunpack.c.l.b16 %v227
    %v510 = vunpack.c.l.b16 %v228
    %v511 = vunpack.c.h.b16 %v228
    %v512 = vunpack.c.l.b16 %v229
    %v513 = vunpack.c.l.b16 %v230
    %v514 = vunpack.c.h.b16 %v230
    %v515 = vunpack.c.l.b16 %v231
    %v516 = vunpack.c.l.b16 %v232
    %v517 = vunpack.c.h.b16 %v232
    %v518 = vunpack.c.l.b16 %v233
    %v519 = vunpack.c.l.b16 %v234
    %v520 = vunpack.c.h.b16 %v234
    %v521 = vunpack.c.l.b16 %v235
    %v522 = vunpack.c.l.b16 %v236
    %v523 = vunpack.c.h.b16 %v236
    %v524 = vunpack.c.l.b16 %v237
    %v525 = vunpack.c.l.b16 %v238
    %v526 = vunpack.c.h.b16 %v238
    %v527 = vunpack.c.l.b16 %v239
    %v528 = vunpack.c.l.b16 %v240
    %v529 = vunpack.c.h.b16 %v240
    %v530 = vunpack.c.l.b16 %v241
    %v531 = vunpack.c.l.b16 %v242
    %v532 = vunpack.c.h.b16 %v242
    %v533 = vunpack.c.l.b16 %v243
    %v534 = vunpack.c.l.b16 %v244
    %v535 = vunpack.c.h.b16 %v244
    %v536 = vunpack.c.l.b16 %v245
    %v537 = vunpack.c.l.b16 %v246
    %v538 = vunpack.c.h.b16 %v246
    %v539 = vunpack.c.l.b16 %v247
    %v540 = vunpack.c.l.b16 %v248
    %v541 = vunpack.c.h.b16 %v248
    %v542 = vunpack.c.l.b16 %v249
    %v543 = vunpack.c.l.b16 %v250
    %v544 = vunpack.c.h.b16 %v250
    %v545 = vunpack.c.l.b16 %v251
    %v546 = vunpack.c.l.b16 %v252
    %v547 = vunpack.c.h.b16 %v252
    %v548 = vunpack.c.l.b16 %v253
    %v549 = vunpack.c.l.b16 %v254
    %v550 = vunpack.c.h.b16 %v254
    %v551 = vunpack.c.l.b16 %v255
    %v552 = vunpack.c.l.b16 %v256
    %v553 = vunpack.c.h.b16 %v256
    %v554 = vunpack.c.l.b16 %v257
    %v555 = vunpack.c.l.b16 %v258
    %v556 = vunpack.c.h.b16 %v258
    %v557 = vunpack.c.l.b16 %v259
    %v558 = vunpack.c.l.b16 %v260
    %v559 = vunpack.c.h.b16 %v260
    %v560 = vunpack.c.l.b16 %v261
    %v561 = vunpack.c.l.b16 %v262
    %v562 = vunpack.c.h.b16 %v262
    %v563 = vunpack.c.l.b16 %v263
    %v564 = vunpack.c.l.b16 %v264
    %v565 = vunpack.c.h.b16 %v264
    %v566 = vunpack.c.l.b16 %v265
    %v567 = vunpack.c.l.b16 %v266
    %v568 = vunpack.c.h.b16 %v266
    %v569 = vunpack.c.l.b16 %v267
    %v570 = vunpack.c.l.b16 %v268
    %v571 = vunpack.c.h.b16 %v268
    %v572 = vunpack.c.l.b16 %v269
    %v573 = vunpack.c.l.b16 %v270
    %v574 = vunpack.c.h.b16 %v270
    %v575 = vunpack.c.l.b16 %v271
    %v576 = vunpack.c.l.b16 %v272
    %v577 = vunpack.c.h.b16 %v272
    %v578 = vunpack.c.l.b16 %v273
    %v579 = vunpack.c.l.b16 %v274
    %v580 = vunpack.c.h.b16 %v274
    %v581 = vunpack.c.l.b16 %v275
    %v582 = vunpack.c.l.b16 %v276
    %v583 = vunpack.c.h.b16 %v276
    %v584 = vunpack.c.l.b16 %v277
    %v585 = vunpack.c.l.b16 %v278
    %v586 = vunpack.c.h.b16 %v278
    %v587 = vunpack.c.l.b16 %v279
    %v588 = vunpack.c.l.b16 %v280
    %v589 = vunpack.c.h.b16 %v280
    %v590 = vunpack.c.l.b16 %v281
    %v591 = vunpack.c.l.b16 %v282
    %v592 = vunpack.c.h.b16 %v282
    %v593 = vunpack.c.l.b16 %v283
    %v594 = vunpack.c.l.b16 %v284
    %v595 = vunpack.c.h.b16 %v284
    %v596 = vunpack.c.l.b16 %v285
    %v597 = vunpack.c.l.b16 %v286
    %v598 = vunpack.c.h.b16 %v286
    %v599 = vunpack.c.l.b16 %v287
    %v600 = vunpack.c.l.b16 %v288
    %v601 = vunpack.c.h.b16 %v288
    %v602 = vunpack.c.l.b16 %v289
    %v603 = vunpack.c.l.b16 %v290
    %v604 = vunpack.c.h.b16 %v290
    %v605 = vunpack.c.l.b16 %v291
    %v606 = vunpack.c.l.b16 %v292
    %v607 = vunpack.c.h.b16 %v292
    %v608 = vunpack.c.l.b16 %v293
    %v609 = vunpack.c.l.b16 %v294
    %v610 = vunpack.c.h.b16 %v294
    %v611 = vunpack.c.l.b16 %v295
    %v612 = vunpack.c.l.b16 %v296
    %v613 = vunpack.c.h.b16 %v296
    %v614 = vunpack.c.l.b16 %v297
    %v615 = vunpack.c.l.b16 %v298
    %v616 = vunpack.c.h.b16 %v298
    %v617 = vunpack.c.l.b16 %v299
    %v618 = vunpack.c.l.b16 %v300
    %v619 = vunpack.c.h.b16 %v300
    %v620 = vunpack.c.l.b16 %v301
    %v621 = vunpack.c.l.b16 %v302
    %v622 = vunpack.c.h.b16 %v302
    %v623 = vunpack.c.l.b16 %v303
    %v624 = vunpack.c.l.b16 %v304
    %v625 = vunpack.c.h.b16 %v304
    %v626 = vunpack.c.l.b16 %v305
    %v627 = vunpack.c.l.b16 %v306
    %v628 = vunpack.c.h.b16 %v306
    %v629 = vunpack.c.l.b16 %v307
    %v630 = vunpack.c.l.b16 %v308
    %v631 = vunpack.c.h.b16 %v308
    %v632 = vunpack.c.l.b16 %v309
    %v633 = vunpack.c.l.b16 %v310
    %v634 = vunpack.c.h.b16 %v310
    %v635 = vunpack.c.l.b16 %v311
    %v636 = vunpack.c.l.b16 %v312
    %v637 = vunpack.c.h.b16 %v312
    %v638 = vunpack.c.l.b16 %v313
    %v639 = vunpack.c.l.b16 %v314
    %v640 = vunpack.c.h.b16 %v314
    %v641 = vunpack.c.l.b16 %v315
    %v642 = vunpack.c.l.b16 %v316
    %v643 = vunpack.c.h.b16 %v316
    %v644 = vunpack.c.l.b16 %v317
    %v645 = vunpack.c.l.b16 %v318
    %v646 = vunpack.c.h.b16 %v318
    %v647 = vunpack.c.l.b16 %v319
    %v648 = vunpack.c.l.b16 %v320
    %v649 = vunpack.c.h.b16 %v320
    %v650 = vunpack.c.l.b16 %v321
    %v651 = vunpack.c.l.b16 %v322
    %v652 = vunpack.c.h.b16 %v322
    %v653 = vunpack.c.l.b16 %v323
    %v654 = vunpack.c.l.b16 %v324
    %v655 = vunpack.c.h.b16 %v324
    %v656 = vunpack.c.l.b16 %v325
    %v657 = vunpack.c.l.b16 %v326
    %v658 = vunpack.c.h.b16 %v326
    %v659 = vunpack.c.l.b16 %v327
    %v660 = vunpack.c.l.b16 %v328
    %v661 = vunpack.c.h.b16 %v328
    %v662 = vunpack.c.l.b16 %v329
    %v663 = vunpack.c.l.b16 %v330
    %v664 = vunpack.c.h.b16 %v330
    %v665 = vunpack.c.l.b16 %v331
    %v666 = vunpack.c.l.b16 %v332
    %v667 = vunpack.c.h.b16 %v332
    %v668 = vunpack.c.l.b16 %v333
    %v669 = vunpack.c.l.b16 %v334
    %v670 = vunpack.c.h.b16 %v334
    %v671 = vunpack.c.l.b16 %v335
    %v672 = vunpack.c.l.b16 %v336
    %v673 = vunpack.c.h.b16 %v336
    %v674 = vunpack.c.l.b16 %v337
    %v675 = vpack.c.b16 %v486, %v483
    %v676 = vpack.c.b16 %v487, %v484
    %v677 = vpack.c.b16 %v488, %v485
    %v678 = vpack.c.b16 %v492, %v489
    %v679 = vpack.c.b16 %v493, %v490
    %v680 = vpack.c.b16 %v494, %v491
    %v681 = vpack.c.b16 %v498, %v495
    %v682 = vpack.c.b16 %v499, %v496
    %v683 = vpack.c.b16 %v500, %v497
    %v684 = vpack.c.b16 %v504, %v501
    %v685 = vpack.c.b16 %v505, %v502
    %v686 = vpack.c.b16 %v506, %v503
    %v687 = vpack.c.b16 %v510, %v507
    %v688 = vpack.c.b16 %v511, %v508
    %v689 = vpack.c.b16 %v512, %v509
    %v690 = vpack.c.b16 %v516, %v513
    %v691 = vpack.c.b16 %v517, %v514
    %v692 = vpack.c.b16 %v518, %v515
    %v693 = vpack.c.b16 %v522, %v519
    %v694 = vpack.c.b16 %v523, %v520
    %v695 = vpack.c.b16 %v524, %v521
    %v696 = vpack.c.b16 %v528, %v525
    %v697 = vpack.c.b16 %v529, %v526
    %v698 = vpack.c.b16 %v530, %v527
    %v699 = vpack.c.b16 %v534, %v531
    %v700 = vpack.c.b16 %v535, %v532
    %v701 = vpack.c.b16 %v536, %v533
    %v702 = vpack.c.b16 %v540, %v537
    %v703 = vpack.c.b16 %v541, %v538
    %v704 = vpack.c.b16 %v542, %v539
    %v705 = vpack.c.b16 %v546, %v543
    %v706 = vpack.c.b16 %v547, %v544
    %v707 = vpack.c.b16 %v548, %v545
    %v708 = vpack.c.b16 %v552, %v549
    %v709 = vpack.c.b16 %v553, %v550
    %v710 = vpack.c.b16 %v554, %v551
    %v711 = vpack.c.b16 %v558, %v555
    %v712 = vpack.c.b16 %v559, %v556
    %v713 = vpack.c.b16 %v560, %v557
    %v714 = vpack.c.b16 %v564, %v561
    %v715 = vpack.c.b16 %v565, %v562
    %v716 = vpack.c.b16 %v566, %v563
    %v717 = vpack.c.b16 %v570, %v567
    %v718 = vpack.c.b16 %v571, %v568
    %v719 = vpack.c.b16 %v572, %v569
    %v720 = vpack.c.b16 %v576, %v573
    %v721 = vpack.c.b16 %v577, %v574
    %v722 = vpack.c.b16 %v578, %v575
    %v723 = vpack.c.b16 %v582, %v579
    %v724 = vpack.c.b16 %v583, %v580
    %v725 = vpack.c.b16 %v584, %v581
    %v726 = vpack.c.b16 %v588, %v585
    %v727 = vpack.c.b16 %v589, %v586
    %v728 = vpack.c.b16 %v590, %v587
    %v729 = vpack.c.b16 %v594, %v591
    %v730 = vpack.c.b16 %v595, %v592
    %v731 = vpack.c.b16 %v596, %v593
    %v732 = vpack.c.b16 %v600, %v597
    %v733 = vpack.c.b16 %v601, %v598
    %v734 = vpack.c.b16 %v602, %v599
    %v735 = vpack.c.b16 %v606, %v603
    %v736 = vpack.c.b16 %v607, %v604
    %v737 = vpack.c.b16 %v608, %v605
    %v738 = vpack.c.b16 %v612, %v609
    %v739 = vpack.c.b16 %v613, %v610
    %v740 = vpack.c.b16 %v614, %v611
    %v741 = vpack.c.b16 %v618, %v615
    %v742 = vpack.c.b16 %v619, %v616
    %v743 = vpack.c.b16 %v620, %v617
    %v744 = vpack.c.b16 %v624, %v621
    %v745 = vpack.c.b16 %v625, %v622
    %v746 = vpack.c.b16 %v626, %v623
    %v747 = vpack.c.b16 %v630, %v627
    %v748 = vpack.c.b16 %v631, %v628
    %v749 = vpack.c.b16 %v632, %v629
    %v750 = vpack.c.b16 %v636, %v633
    %v751 = vpack.c.b16 %v637, %v634
    %v752 = vpack.c.b16 %v638, %v635
    %v753 = vpack.c.b16 %v642, %v639
    %v754 = vpack.c.b16 %v643, %v640
    %v755 = vpack.c.b16 %v644, %v641
    %v756 = vpack.c.b16 %v648, %v645
    %v757 = vpack.c.b16 %v649, %v646
    %v758 = vpack.c.b16 %v650, %v647
    %v759 = vpack.c.b16 %v654, %v651
    %v760 = vpack.c.b16 %v655, %v652
    %v761 = vpack.c.b16 %v656, %v653
    %v762 = vpack.c.b16 %v660, %v657
    %v763 = vpack.c.b16 %v661, %v658
    %v764 = vpack.c.b16 %v662, %v659
    %v765 = vpack.c.b16 %v666, %v663
    %v766 = vpack.c.b16 %v667, %v664
    %v767 = vpack.c.b16 %v668, %v665
    %v768 = vpack.c.b16 %v672, %v669
    %v769 = vpack.c.b16 %v673, %v670
    %v770 = vpack.c.b16 %v674, %v671
    %867 = vmatprep.subr.bf16.mxu0 %v697
    %868 = vmatpush1.bf16.msra.mxu0 %v696
    %869 = vmatprep.subr.bf16.mxu0 %v694
    %870 = vmatpush1.bf16.msra.mxu0 %v693
    %871 = vmatprep.subr.bf16.mxu0 %v691
    %872 = vmatpush1.bf16.msra.mxu0 %v690
    %873 = vmatprep.subr.bf16.mxu0 %v688
    %874 = vmatpush1.bf16.msra.mxu0 %v687
    %875 = vmatprep.subr.bf16.mxu0 %v685
    %876 = vmatpush1.bf16.msra.mxu0 %v684
    %877 = vmatprep.subr.bf16.mxu0 %v682
    %878 = vmatpush1.bf16.msra.mxu0 %v681
    %879 = vmatprep.subr.bf16.mxu0 %v679
    %880 = vmatpush1.bf16.msra.mxu0 %v678
    %881 = vmatprep.subr.bf16.mxu0 %v676
    %882 = vmatpush1.bf16.msra.mxu0 %v675
    %883 = vmatprep.subr.bf16.mxu0 %v721
    %884 = vmatpush2.bf16.msra.mxu0 %v720
    %885 = vmatprep.subr.bf16.mxu0 %v718
    %886 = vmatpush2.bf16.msra.mxu0 %v717
    %887 = vmatprep.subr.bf16.mxu0 %v715
    %888 = vmatpush2.bf16.msra.mxu0 %v714
    %889 = vmatprep.subr.bf16.mxu0 %v712
    %890 = vmatpush2.bf16.msra.mxu0 %v711
    %891 = vmatprep.subr.bf16.mxu0 %v709
    %892 = vmatpush2.bf16.msra.mxu0 %v708
    %893 = vmatprep.subr.bf16.mxu0 %v706
    %894 = vmatpush2.bf16.msra.mxu0 %v705
    %895 = vmatprep.subr.bf16.mxu0 %v703
    %896 = vmatpush2.bf16.msra.mxu0 %v702
    %897 = vmatprep.subr.bf16.mxu0 %v700
    %898 = vmatpush2.bf16.msra.mxu0 %v699
    %899 = vmatprep.mubr.bf16.mxu0 %v207
    %900 = vmatmul.mubr.bf16.gmra.mxu0 %v206
    %v901 = vpop.f32.mrf.mxu0
    %v902 = vadd.f32 %v343, %v901
    %v903 = vpop.f32.mrf.mxu0
    %v904 = vadd.f32 %v347, %v903
    %v905 = vpop.f32.mrf.mxu0
    %v906 = vpop.f32.mrf.mxu0
    %907 = vdwg.mxu0
    %908 = vmatprep.subr.bf16.mxu0 %v745
    %909 = vmatpush1.bf16.msra.mxu0 %v744
    %910 = vmatprep.subr.bf16.mxu0 %v742
    %911 = vmatpush1.bf16.msra.mxu0 %v741
    %912 = vmatprep.subr.bf16.mxu0 %v739
    %913 = vmatpush1.bf16.msra.mxu0 %v738
    %914 = vmatprep.subr.bf16.mxu0 %v736
    %915 = vmatpush1.bf16.msra.mxu0 %v735
    %916 = vmatprep.subr.bf16.mxu0 %v733
    %917 = vmatpush1.bf16.msra.mxu0 %v732
    %918 = vmatprep.subr.bf16.mxu0 %v730
    %919 = vmatpush1.bf16.msra.mxu0 %v729
    %920 = vmatprep.subr.bf16.mxu0 %v727
    %921 = vmatpush1.bf16.msra.mxu0 %v726
    %922 = vmatprep.subr.bf16.mxu0 %v724
    %923 = vmatpush1.bf16.msra.mxu0 %v723
    %924 = vmatprep.subr.bf16.mxu0 %v769
    %925 = vmatpush2.bf16.msra.mxu0 %v768
    %926 = vmatprep.subr.bf16.mxu0 %v766
    %927 = vmatpush2.bf16.msra.mxu0 %v765
    %928 = vmatprep.subr.bf16.mxu0 %v763
    %929 = vmatpush2.bf16.msra.mxu0 %v762
    %930 = vmatprep.subr.bf16.mxu0 %v760
    %931 = vmatpush2.bf16.msra.mxu0 %v759
    %932 = vmatprep.subr.bf16.mxu0 %v757
    %933 = vmatpush2.bf16.msra.mxu0 %v756
    %934 = vmatprep.subr.bf16.mxu0 %v754
    %935 = vmatpush2.bf16.msra.mxu0 %v753
    %936 = vmatprep.subr.bf16.mxu0 %v751
    %937 = vmatpush2.bf16.msra.mxu0 %v750
    %938 = vmatprep.subr.bf16.mxu0 %v748
    %939 = vmatpush2.bf16.msra.mxu0 %v747
    %940 = vmatprep.mubr.bf16.mxu0 %v209
    %941 = vmatmul.mubr.bf16.gmra.mxu0 %v208
    %v942 = vpop.f32.mrf.mxu0
    %v943 = vadd.f32 %v902, %v942
    %v944 = vpop.f32.mrf.mxu0
    %v945 = vadd.f32 %v904, %v944
    %v946 = vpop.f32.mrf.mxu0
    %v947 = vpop.f32.mrf.mxu0
    %948 = vdwg.mxu0
    %949 = vmatprep.subr.bf16.mxu0 0
    %950 = vmatpush1.bf16.msra.mxu0 %v698
    %951 = vmatprep.subr.bf16.mxu0 0
    %952 = vmatpush1.bf16.msra.mxu0 %v695
    %953 = vmatprep.subr.bf16.mxu0 0
    %954 = vmatpush1.bf16.msra.mxu0 %v692
    %955 = vmatprep.subr.bf16.mxu0 0
    %956 = vmatpush1.bf16.msra.mxu0 %v689
    %957 = vmatprep.subr.bf16.mxu0 0
    %958 = vmatpush1.bf16.msra.mxu0 %v686
    %959 = vmatprep.subr.bf16.mxu0 0
    %960 = vmatpush1.bf16.msra.mxu0 %v683
    %961 = vmatprep.subr.bf16.mxu0 0
    %962 = vmatpush1.bf16.msra.mxu0 %v680
    %963 = vmatprep.subr.bf16.mxu0 0
    %964 = vmatpush1.bf16.msra.mxu0 %v677
    %965 = vmatprep.subr.bf16.mxu0 0
    %966 = vmatpush2.bf16.msra.mxu0 %v722
    %967 = vmatprep.subr.bf16.mxu0 0
    %968 = vmatpush2.bf16.msra.mxu0 %v719
    %969 = vmatprep.subr.bf16.mxu0 0
    %970 = vmatpush2.bf16.msra.mxu0 %v716
    %971 = vmatprep.subr.bf16.mxu0 0
    %972 = vmatpush2.bf16.msra.mxu0 %v713
    %973 = vmatprep.subr.bf16.mxu0 0
    %974 = vmatpush2.bf16.msra.mxu0 %v710
    %975 = vmatprep.subr.bf16.mxu0 0
    %976 = vmatpush2.bf16.msra.mxu0 %v707
    %977 = vmatprep.subr.bf16.mxu0 0
    %978 = vmatpush2.bf16.msra.mxu0 %v704
    %979 = vmatprep.subr.bf16.mxu0 0
    %980 = vmatpush2.bf16.msra.mxu0 %v701
    %981 = vmatprep.mubr.bf16.mxu0 %v207
    %982 = vmatmul.mubr.bf16.gmra.mxu0 %v206
    %v983 = vpop.f32.mrf.mxu0
    %v984 = vadd.f32 %v351, %v983
    %v985 = vpop.f32.mrf.mxu0
    %v986 = vpop.f32.mrf.mxu0
    %v987 = vpop.f32.mrf.mxu0
    %988 = vdwg.mxu0
    %989 = vmatprep.subr.bf16.mxu0 0
    %990 = vmatpush1.bf16.msra.mxu0 %v746
    %991 = vmatprep.subr.bf16.mxu0 0
    %992 = vmatpush1.bf16.msra.mxu0 %v743
    %993 = vmatprep.subr.bf16.mxu0 0
    %994 = vmatpush1.bf16.msra.mxu0 %v740
    %995 = vmatprep.subr.bf16.mxu0 0
    %996 = vmatpush1.bf16.msra.mxu0 %v737
    %997 = vmatprep.subr.bf16.mxu0 0
    %998 = vmatpush1.bf16.msra.mxu0 %v734
    %999 = vmatprep.subr.bf16.mxu0 0
    %1000 = vmatpush1.bf16.msra.mxu0 %v731
    %1001 = vmatprep.subr.bf16.mxu0 0
    %1002 = vmatpush1.bf16.msra.mxu0 %v728
    %1003 = vmatprep.subr.bf16.mxu0 0
    %1004 = vmatpush1.bf16.msra.mxu0 %v725
    %1005 = vmatprep.subr.bf16.mxu0 0
    %1006 = vmatpush2.bf16.msra.mxu0 %v770
    %1007 = vmatprep.subr.bf16.mxu0 0
    %1008 = vmatpush2.bf16.msra.mxu0 %v767
    %1009 = vmatprep.subr.bf16.mxu0 0
    %1010 = vmatpush2.bf16.msra.mxu0 %v764
    %1011 = vmatprep.subr.bf16.mxu0 0
    %1012 = vmatpush2.bf16.msra.mxu0 %v761
    %1013 = vmatprep.subr.bf16.mxu0 0
    %1014 = vmatpush2.bf16.msra.mxu0 %v758
    %1015 = vmatprep.subr.bf16.mxu0 0
    %1016 = vmatpush2.bf16.msra.mxu0 %v755
    %1017 = vmatprep.subr.bf16.mxu0 0
    %1018 = vmatpush2.bf16.msra.mxu0 %v752
    %1019 = vmatprep.subr.bf16.mxu0 0
    %1020 = vmatpush2.bf16.msra.mxu0 %v749
    %1021 = vmatprep.mubr.bf16.mxu0 %v209
    %1022 = vmatmul.mubr.bf16.gmra.mxu0 %v208
    %v1023 = vpop.f32.mrf.mxu0
    %v1024 = vadd.f32 %v984, %v1023
    %v1025 = vpop.f32.mrf.mxu0
    %v1026 = vpop.f32.mrf.mxu0
    %v1027 = vpop.f32.mrf.mxu0
    %1028 = vdwg.mxu0
    %v1029 = vmax.f32 %v943, 0.0
    %v1030 = vmax.f32 %v945, 0.0
    %v1031 = vmax.f32 %v1024, 0.0
    %v1032 = vpack.c.bf16 %v1029, %v1029
    %v1033 = vpack.c.bf16 %v1030, %v1030
    %v1034 = vpack.c.bf16 %v1031, %v1031
    %v1035 = vld [vmem:[%s5] sm:$0xf]
    %v1036 = vld [vmem:[%s5 + $0x4] sm:$0xf]
    %v1037 = vld [vmem:[%s5 + $0x8] sm:$0xf]
    %v1038 = vld [vmem:[%s5 + $0xc] sm:$0xf]
    %v1039 = vld [vmem:[%s5 + $0x10] sm:$0xf]
    %v1040 = vld [vmem:[%s5 + $0x14] sm:$0xf]
    %v1041 = vld [vmem:[%s5 + $0x18] sm:$0xf]
    %v1042 = vld [vmem:[%s5 + $0x1c] sm:$0xf]
    %v1043 = vld [vmem:[%s5 + $0x20] sm:$0xf]
    %v1044 = vld [vmem:[%s5 + $0x24] sm:$0xf]
    %v1045 = vld [vmem:[%s5 + $0x28] sm:$0xf]
    %v1046 = vld [vmem:[%s5 + $0x2c] sm:$0xf]
    %v1047 = vld [vmem:[%s5 + $0x30] sm:$0xf]
    %v1048 = vld [vmem:[%s5 + $0x34] sm:$0xf]
    %v1049 = vld [vmem:[%s5 + $0x38] sm:$0xf]
    %v1050 = vld [vmem:[%s5 + $0x3c] sm:$0xf]
    %v1051 = vld [vmem:[%s5 + $0x40] sm:$0xf]
    %v1052 = vld [vmem:[%s5 + $0x44] sm:$0xf]
    %v1053 = vld [vmem:[%s5 + $0x48] sm:$0xf]
    %v1054 = vld [vmem:[%s5 + $0x4c] sm:$0xf]
    %v1055 = vld [vmem:[%s5 + $0x50] sm:$0xf]
    %v1056 = vld [vmem:[%s5 + $0x54] sm:$0xf]
    %v1057 = vld [vmem:[%s5 + $0x58] sm:$0xf]
    %v1058 = vld [vmem:[%s5 + $0x5c] sm:$0xf]
    %v1059 = vld [vmem:[%s5 + $0x60] sm:$0xf]
    %v1060 = vld [vmem:[%s5 + $0x64] sm:$0xf]
    %v1061 = vld [vmem:[%s5 + $0x68] sm:$0xf]
    %v1062 = vld [vmem:[%s5 + $0x6c] sm:$0xf]
    %v1063 = vld [vmem:[%s5 + $0x70] sm:$0xf]
    %v1064 = vld [vmem:[%s5 + $0x74] sm:$0xf]
    %v1065 = vld [vmem:[%s5 + $0x78] sm:$0xf]
    %v1066 = vld [vmem:[%s5 + $0x7c] sm:$0xf]
    %v1067 = vld [vmem:[%s5 + $0x80] sm:$0xf]
    %v1068 = vld [vmem:[%s5 + $0x84] sm:$0xf]
    %v1069 = vld [vmem:[%s5 + $0x88] sm:$0xf]
    %v1070 = vld [vmem:[%s5 + $0x8c] sm:$0xf]
    %v1071 = vld [vmem:[%s5 + $0x90] sm:$0xf]
    %v1072 = vld [vmem:[%s5 + $0x94] sm:$0xf]
    %v1073 = vld [vmem:[%s5 + $0x98] sm:$0xf]
    %v1074 = vld [vmem:[%s5 + $0x9c] sm:$0xf]
    %v1075 = vld [vmem:[%s5 + $0xa0] sm:$0xf]
    %v1076 = vld [vmem:[%s5 + $0xa4] sm:$0xf]
    %v1077 = vld [vmem:[%s5 + $0xa8] sm:$0xf]
    %v1078 = vld [vmem:[%s5 + $0xac] sm:$0xf]
    %v1079 = vld [vmem:[%s5 + $0xb0] sm:$0xf]
    %v1080 = vld [vmem:[%s5 + $0xb4] sm:$0xf]
    %v1081 = vld [vmem:[%s5 + $0xb8] sm:$0xf]
    %v1082 = vld [vmem:[%s5 + $0xbc] sm:$0xf]
    %v1131 = vunpack.c.l.b16 %v1035
    %v1132 = vunpack.c.l.b16 %v1036
    %v1133 = vunpack.c.l.b16 %v1037
    %v1134 = vunpack.c.l.b16 %v1038
    %v1135 = vunpack.c.l.b16 %v1039
    %v1136 = vunpack.c.l.b16 %v1040
    %v1137 = vunpack.c.l.b16 %v1041
    %v1138 = vunpack.c.l.b16 %v1042
    %v1139 = vunpack.c.l.b16 %v1043
    %v1140 = vunpack.c.l.b16 %v1044
    %v1141 = vunpack.c.l.b16 %v1045
    %v1142 = vunpack.c.l.b16 %v1046
    %v1143 = vunpack.c.l.b16 %v1047
    %v1144 = vunpack.c.l.b16 %v1048
    %v1145 = vunpack.c.l.b16 %v1049
    %v1146 = vunpack.c.l.b16 %v1050
    %v1147 = vunpack.c.l.b16 %v1051
    %v1148 = vunpack.c.l.b16 %v1052
    %v1149 = vunpack.c.l.b16 %v1053
    %v1150 = vunpack.c.l.b16 %v1054
    %v1151 = vunpack.c.l.b16 %v1055
    %v1152 = vunpack.c.l.b16 %v1056
    %v1153 = vunpack.c.l.b16 %v1057
    %v1154 = vunpack.c.l.b16 %v1058
    %v1155 = vunpack.c.l.b16 %v1059
    %v1156 = vunpack.c.l.b16 %v1060
    %v1157 = vunpack.c.l.b16 %v1061
    %v1158 = vunpack.c.l.b16 %v1062
    %v1159 = vunpack.c.l.b16 %v1063
    %v1160 = vunpack.c.l.b16 %v1064
    %v1161 = vunpack.c.l.b16 %v1065
    %v1162 = vunpack.c.l.b16 %v1066
    %v1163 = vunpack.c.l.b16 %v1067
    %v1164 = vunpack.c.l.b16 %v1068
    %v1165 = vunpack.c.l.b16 %v1069
    %v1166 = vunpack.c.l.b16 %v1070
    %v1167 = vunpack.c.l.b16 %v1071
    %v1168 = vunpack.c.l.b16 %v1072
    %v1169 = vunpack.c.l.b16 %v1073
    %v1170 = vunpack.c.l.b16 %v1074
    %v1171 = vunpack.c.l.b16 %v1075
    %v1172 = vunpack.c.l.b16 %v1076
    %v1173 = vunpack.c.l.b16 %v1077
    %v1174 = vunpack.c.l.b16 %v1078
    %v1175 = vunpack.c.l.b16 %v1079
    %v1176 = vunpack.c.l.b16 %v1080
    %v1177 = vunpack.c.l.b16 %v1081
    %v1178 = vunpack.c.l.b16 %v1082
    %v1179 = vpack.c.b16 %v1132, %v1131
    %v1180 = vpack.c.b16 %v1134, %v1133
    %v1181 = vpack.c.b16 %v1136, %v1135
    %v1182 = vpack.c.b16 %v1138, %v1137
    %v1183 = vpack.c.b16 %v1140, %v1139
    %v1184 = vpack.c.b16 %v1142, %v1141
    %v1185 = vpack.c.b16 %v1144, %v1143
    %v1186 = vpack.c.b16 %v1146, %v1145
    %v1187 = vpack.c.b16 %v1148, %v1147
    %v1188 = vpack.c.b16 %v1150, %v1149
    %v1189 = vpack.c.b16 %v1152, %v1151
    %v1190 = vpack.c.b16 %v1154, %v1153
    %v1191 = vpack.c.b16 %v1156, %v1155
    %v1192 = vpack.c.b16 %v1158, %v1157
    %v1193 = vpack.c.b16 %v1160, %v1159
    %v1194 = vpack.c.b16 %v1162, %v1161
    %v1195 = vpack.c.b16 %v1164, %v1163
    %v1196 = vpack.c.b16 %v1166, %v1165
    %v1197 = vpack.c.b16 %v1168, %v1167
    %v1198 = vpack.c.b16 %v1170, %v1169
    %v1199 = vpack.c.b16 %v1172, %v1171
    %v1200 = vpack.c.b16 %v1174, %v1173
    %v1201 = vpack.c.b16 %v1176, %v1175
    %v1202 = vpack.c.b16 %v1178, %v1177
    %1227 = vmatprep.subr.bf16.mxu0 0
    %1228 = vmatpush1.bf16.msra.mxu0 %v1186
    %1229 = vmatprep.subr.bf16.mxu0 0
    %1230 = vmatpush1.bf16.msra.mxu0 %v1185
    %1231 = vmatprep.subr.bf16.mxu0 0
    %1232 = vmatpush1.bf16.msra.mxu0 %v1184
    %1233 = vmatprep.subr.bf16.mxu0 0
    %1234 = vmatpush1.bf16.msra.mxu0 %v1183
    %1235 = vmatprep.subr.bf16.mxu0 0
    %1236 = vmatpush1.bf16.msra.mxu0 %v1182
    %1237 = vmatprep.subr.bf16.mxu0 0
    %1238 = vmatpush1.bf16.msra.mxu0 %v1181
    %1239 = vmatprep.subr.bf16.mxu0 0
    %1240 = vmatpush1.bf16.msra.mxu0 %v1180
    %1241 = vmatprep.subr.bf16.mxu0 0
    %1242 = vmatpush1.bf16.msra.mxu0 %v1179
    %1243 = vmatprep.subr.bf16.mxu0 0
    %1244 = vmatpush2.bf16.msra.mxu0 %v1194
    %1245 = vmatprep.subr.bf16.mxu0 0
    %1246 = vmatpush2.bf16.msra.mxu0 %v1193
    %1247 = vmatprep.subr.bf16.mxu0 0
    %1248 = vmatpush2.bf16.msra.mxu0 %v1192
    %1249 = vmatprep.subr.bf16.mxu0 0
    %1250 = vmatpush2.bf16.msra.mxu0 %v1191
    %1251 = vmatprep.subr.bf16.mxu0 0
    %1252 = vmatpush2.bf16.msra.mxu0 %v1190
    %1253 = vmatprep.subr.bf16.mxu0 0
    %1254 = vmatpush2.bf16.msra.mxu0 %v1189
    %1255 = vmatprep.subr.bf16.mxu0 0
    %1256 = vmatpush2.bf16.msra.mxu0 %v1188
    %1257 = vmatprep.subr.bf16.mxu0 0
    %1258 = vmatpush2.bf16.msra.mxu0 %v1187
    %1259 = vmatprep.mubr.bf16.mxu0 %v1033
    %1260 = vmatmul.mubr.bf16.gmra.mxu0 %v1032
    %v1261 = vpop.f32.mrf.mxu0
    %v1262 = vadd.f32 0.0, %v1261
    %v1263 = vpop.f32.mrf.mxu0
    %v1264 = vpop.f32.mrf.mxu0
    %v1265 = vpop.f32.mrf.mxu0
    %1266 = vdwg.mxu0
    %1267 = vmatprep.subr.bf16.mxu0 0
    %1268 = vmatpush1.bf16.msra.mxu0 %v1202
    %1269 = vmatprep.subr.bf16.mxu0 0
    %1270 = vmatpush1.bf16.msra.mxu0 %v1201
    %1271 = vmatprep.subr.bf16.mxu0 0
    %1272 = vmatpush1.bf16.msra.mxu0 %v1200
    %1273 = vmatprep.subr.bf16.mxu0 0
    %1274 = vmatpush1.bf16.msra.mxu0 %v1199
    %1275 = vmatprep.subr.bf16.mxu0 0
    %1276 = vmatpush1.bf16.msra.mxu0 %v1198
    %1277 = vmatprep.subr.bf16.mxu0 0
    %1278 = vmatpush1.bf16.msra.mxu0 %v1197
    %1279 = vmatprep.subr.bf16.mxu0 0
    %1280 = vmatpush1.bf16.msra.mxu0 %v1196
    %1281 = vmatprep.subr.bf16.mxu0 0
    %1282 = vmatpush1.bf16.msra.mxu0 %v1195
    %1283 = vmatprep.subr.bf16.mxu0 0
    %1284 = vmatpush2.bf16.msra.mxu0 0
    %1285 = vmatprep.subr.bf16.mxu0 0
    %1286 = vmatpush2.bf16.msra.mxu0 0
    %1287 = vmatprep.subr.bf16.mxu0 0
    %1288 = vmatpush2.bf16.msra.mxu0 0
    %1289 = vmatprep.subr.bf16.mxu0 0
    %1290 = vmatpush2.bf16.msra.mxu0 0
    %1291 = vmatprep.subr.bf16.mxu0 0
    %1292 = vmatpush2.bf16.msra.mxu0 0
    %1293 = vmatprep.subr.bf16.mxu0 0
    %1294 = vmatpush2.bf16.msra.mxu0 0
    %1295 = vmatprep.subr.bf16.mxu0 0
    %1296 = vmatpush2.bf16.msra.mxu0 0
    %1297 = vmatprep.subr.bf16.mxu0 0
    %1298 = vmatpush2.bf16.msra.mxu0 0
    %1299 = vmatprep.mubr.bf16.mxu0 0
    %1300 = vmatmul.mubr.bf16.gmra.mxu0 %v1034
    %v1301 = vpop.f32.mrf.mxu0
    %v1302 = vadd.f32 %v1262, %v1301
    %v1303 = vpop.f32.mrf.mxu0
    %v1304 = vpop.f32.mrf.mxu0
    %v1305 = vpop.f32.mrf.mxu0
    %1306 = vdwg.mxu0
    %vm1307 = vcmask 64512
    %v1308 = vsel %vm1307, %v1302, 0.0
    %v1309 = vrot.slane %v1308, 4
    %v1310 = vadd.f32 %v1308, %v1309
    %v1311 = vrot.slane %v1310, 2
    %v1312 = vadd.f32 %v1310, %v1311
    %v1313 = vrot.slane %v1312, 1
    %v1314 = vadd.f32 %v1312, %v1313
    %v1315 = vrcp.pop 8.0
    %v1316 = vmul.f32 %v1314, %v1315
    %v1317 = vsub.f32 %v1302, %v1316
    %v1318 = vmul.f32 %v1317, %v1317
    %v1319 = vsel %vm1307, %v1318, 0.0
    %v1320 = vrot.slane %v1319, 4
    %v1321 = vadd.f32 %v1319, %v1320
    %v1322 = vrot.slane %v1321, 2
    %v1323 = vadd.f32 %v1321, %v1322
    %v1324 = vrot.slane %v1323, 1
    %v1325 = vadd.f32 %v1323, %v1324
    %v1326 = vmul.f32 %v1325, %v1315
    %v1327 = vadd.f32 %v1326, 1e-05
    %v1328 = vrsqrt.pop %v1327
    %v1329 = vmul.f32 %v1317, %v1328
    %v1330 = vld [vmem:[%s6] sm:$0x1]
    %v1332 = vlaneseq
    %v1333 = vshrl.u32 %v1332, 7
    %v1334 = vsub.s32 0, %v1333
    %v1335 = vrot.slane %v1330, %v1334
    %v1337 = vmul.f32 %v1329, %v1335
    %v1338 = vld [vmem:[%s7] sm:$0x1]
    %v1340 = vlaneseq
    %v1341 = vshrl.u32 %v1340, 7
    %v1342 = vsub.s32 0, %v1341
    %v1343 = vrot.slane %v1338, %v1342
    %v1345 = vadd.f32 %v1337, %v1343
    %v1346 = vtanh.pop %v1345
    %1347 = vst.msk [vmem:[#allocation5] sm:$0xff] %vm1307, %v1346
    // Predicated region
    $region38: #{tpu_custom_call.1} parent=1 // pred_check
      _
    $region39: #{tpu_custom_call.1} parent=1 // pred_check_branch
      %1349 = sbr.rel (0) target = $region41
    $region40: #{tpu_custom_call.1} parent=1 // pred_region
      %s1351 = ssub.s32 128, 128
      %1352 = vsyncadd [#allocation4], %s1351
      %s1354 = sshll.u32 [#allocation5], 4
      %s1355 = int_to_ptr.vmem [resolvable:$true] %s1354
      %1357 = dma.vmem_to_hbm [thread:$0]  %s1355, 128, %s8, [#allocation4]
    $region41: #{tpu_custom_call.1} parent=1 // pred_fallthru
      _
    // Predicated region
    $region42: #{tpu_custom_call.1} parent=1 // pred_check
      _
    $region43: #{tpu_custom_call.1} parent=1 // pred_check_branch
      %1359 = sbr.rel (0) target = $region45
    $region44: #{tpu_custom_call.1} parent=1 // pred_region
      %1360 = dma.done [#allocation4], 128
    $region45: #{tpu_custom_call.1} parent=1 // pred_fallthru
      _
    %1361 = vsyncpa [#allocation3], 1
    %1362 = vsyncpa [#allocation4], 1

</llo_original>
